<compile_context>
chip_gen: v5e
topology: v5e:2x2
jax: 0.10.0
libtpu: 0.0.40
codegen_flags: <defaults>
</compile_context>

<pallas_src>
import jax
import jax.numpy as jnp
from jax.experimental import pallas as pl
from jax.experimental.pallas import tpu as pltpu


def additive_attention_kernel(x_ref, w1_ref, b1_ref, wv_ref, out_ref, wts_ref):
    TB, S, D = x_ref.shape                     # context block (TB, S, D)

    x3 = x_ref[...]                            # native dtype (f32 / bf16)
    xf = x3.reshape(TB * S, D)                 # merge leading dims (S is a
                                               # multiple of 8 -> layout-preserving)

    w1 = w1_ref[...]                           # (D, V)
    b1 = b1_ref[...].astype(jnp.float32)       # (1, V)
    wv = wv_ref[...].astype(jnp.float32)       # (1, V)

    # proj: Linear(D -> V) + Tanh — one big MXU matmul over all TB*S rows,
    # f32 accumulation (MXU takes bf16/f32 natively, no eager cast of x).
    h = jnp.tanh(jnp.dot(xf, w1, preferred_element_type=jnp.float32) + b1)   # (TB*S, V) f32

    # proj_v: Linear(V -> 1) as VPU multiply + lane reduce (keeps the MXU free;
    # an (., V) @ (V, 1) matmul would use <1% of the systolic array).
    # bv is omitted: a constant score offset cancels in the softmax below.
    s3 = jnp.sum(h * wv, axis=-1, keepdims=True).reshape(TB, S, 1)           # (TB, S, 1)

    # Numerically stable softmax over the sequence axis (axis=1 -> sublanes).
    m = jnp.max(s3, axis=1, keepdims=True)                                   # (TB, 1, 1)
    e = jnp.exp(s3 - m)
    w3 = e / jnp.sum(e, axis=1, keepdims=True)                               # (TB, S, 1)

    # pooled == bmm(weights, context): weighted sum over the sequence axis.
    pooled = jnp.sum(w3 * x3.astype(jnp.float32), axis=1)                    # (TB, D)
    out_ref[...] = pooled.astype(out_ref.dtype)                              # (TB, D) slab

    # Lane-dense (TB, S) weights store.  w3 has S on sublanes; move it onto
    # lanes with a broadcast * identity-mask + sublane reduce (iota/compare/
    # mul/reduce only — all robustly lowerable; cost is negligible vs. the
    # (TB*S, D) @ (D, V) matmul since S << D*V).
    sub = jax.lax.broadcasted_iota(jnp.int32, (1, S, S), 1)
    lane = jax.lax.broadcasted_iota(jnp.int32, (1, S, S), 2)
    eye = (sub == lane).astype(jnp.float32)                                  # (1, S, S)
    wts_ref[...] = jnp.sum(w3 * eye, axis=1).astype(wts_ref.dtype)           # (TB, S) slab


def _pick_batch_tile(B, S, D, itemsize):
    """Batches per grid step: fill the MXU M dim, stay inside a VMEM budget."""
    # >=256 flattened rows fills the 256-wide v6e/v7x MXU (v5e saturates at 128).
    rows_target = 512
    tb = min(B, max(1, pl.cdiv(rows_target, S)))
    # Budget: double-buffered context block + f32 intermediates.  Kept well
    # under the 32 MiB scoped default and v7x's 64 MiB physical VMEM.
    budget = 8 * 1024 * 1024

    def footprint(t):
        return 2 * t * S * D * itemsize + 4 * t * S * (D + S + 8)

    while tb > 1 and footprint(tb) > budget:
        tb = pl.cdiv(tb, 2)
    if tb < B:
        # Multi-step grid: keep the (tb, D)/(tb, S) output blocks sublane-aligned.
        tb = max(8, (tb // 8) * 8)
    return tb


def additive_attention(context, w1, b1, wv, bv=None, *, batch_tile=None):
    """context: [B, S, D] -> (pooled [B, D], attention weights [B, S])."""
    B, S, D = context.shape
    V = w1.shape[1]
    del bv  # constant over the sequence axis -> cancels in the softmax

    tb = batch_tile if batch_tile is not None else _pick_batch_tile(
        B, S, D, context.dtype.itemsize)
    num_tiles = pl.cdiv(B, tb)
    Bp = num_tiles * tb
    ctx = context if Bp == B else jnp.pad(context, ((0, Bp - B), (0, 0), (0, 0)))

    out, wts = pl.pallas_call(
        additive_attention_kernel,
        out_shape=(
            jax.ShapeDtypeStruct((Bp, D), context.dtype),
            jax.ShapeDtypeStruct((Bp, S), jnp.float32),
        ),
        grid_spec=pltpu.PrefetchScalarGridSpec(
            num_scalar_prefetch=0,
            grid=(num_tiles,),
            in_specs=[
                pl.BlockSpec((tb, S, D), lambda b: (b, 0, 0)),   # context tile
                pl.BlockSpec((D, V), lambda b: (0, 0)),          # W1 (resident)
                pl.BlockSpec((1, V), lambda b: (0, 0)),          # b1
                pl.BlockSpec((1, V), lambda b: (0, 0)),          # wv as a row
            ],
            out_specs=[
                pl.BlockSpec((tb, D), lambda b: (b, 0)),         # pooled slab
                pl.BlockSpec((tb, S), lambda b: (b, 0)),         # weights slab
            ],
        ),
        compiler_params=pltpu.CompilerParams(
            dimension_semantics=("parallel",)),   # v7x: shard tiles over 2 TCs
    )(ctx, w1, b1.reshape(1, V), wv.reshape(1, V))

    return out[:B], wts[:B]


def reference(context, w1, b1, wv, bv):
    h = jnp.tanh(jnp.einsum("bsd,dv->bsv", context, w1) + b1)
    scores = jnp.einsum("bsv,vo->bso", h, wv)[..., 0] + bv
    weights = jax.nn.softmax(scores, axis=-1)
    out = jnp.einsum("bs,bsd->bd", weights, context)
    return out, weights


if __name__ == "__main__":
    # Small shapes consistent with the module:
    # B=2, seq_len=8, in_dim(llm_review_size)=32, v_size=64
    B, S, D, V = 2, 8, 32, 64

    key = jax.random.PRNGKey(0)
    k_ctx, k_w1, k_b1, k_wv, k_bv, k_ctx2 = jax.random.split(key, 6)

    context = jax.random.normal(k_ctx, (B, S, D), dtype=jnp.float32)
    w1 = jax.random.normal(k_w1, (D, V), dtype=jnp.float32) * (1.0 / jnp.sqrt(D))
    b1 = jax.random.normal(k_b1, (V,), dtype=jnp.float32) * 0.01
    wv = jax.random.normal(k_wv, (V, 1), dtype=jnp.float32) * (1.0 / jnp.sqrt(V))
    bv = jax.random.normal(k_bv, (1,), dtype=jnp.float32) * 0.01

    out, wts = additive_attention(context, w1, b1, wv, bv)
    jax.block_until_ready((out, wts))

    out_ref, wts_ref = reference(context, w1, b1, wv, bv)
    assert jnp.allclose(out, out_ref, atol=1e-5, rtol=1e-5), "output mismatch"
    assert jnp.allclose(wts, wts_ref, atol=1e-5, rtol=1e-5), "weights mismatch"
    assert jnp.allclose(jnp.sum(wts, axis=-1), 1.0, atol=1e-5), "softmax not normalized"

    # Second config: exercises batch padding + a multi-step "parallel" grid.
    B2 = 20
    context2 = jax.random.normal(k_ctx2, (B2, S, D), dtype=jnp.float32)
    out2, wts2 = additive_attention(context2, w1, b1, wv, bv, batch_tile=8)
    jax.block_until_ready((out2, wts2))
    out2_ref, wts2_ref = reference(context2, w1, b1, wv, bv)
    assert jnp.allclose(out2, out2_ref, atol=1e-5, rtol=1e-5), "tiled output mismatch"
    assert jnp.allclose(wts2, wts2_ref, atol=1e-5, rtol=1e-5), "tiled weights mismatch"

    print("KERNEL_OK")
</pallas_src>

<mosaic_0001>
module attributes {stable_mosaic.version = 11 : i64} {
  func.func @additive_attention_kernel(%arg0: i32, %arg1: memref<2x8x32xf32, #tpu.memory_space<vmem>>, %arg2: memref<32x64xf32, #tpu.memory_space<vmem>>, %arg3: memref<1x64xf32, #tpu.memory_space<vmem>>, %arg4: memref<1x64xf32, #tpu.memory_space<vmem>>, %arg5: memref<2x32xf32, #tpu.memory_space<vmem>>, %arg6: memref<2x8xf32, #tpu.memory_space<vmem>>) attributes {dimension_semantics = [#tpu.dimension_semantics<parallel>], iteration_bounds = array<i64: 1>, scalar_prefetch = 0 : i64, scratch_operands = 0 : i64, tpu.core_type = #tpu.core_type<tc>, window_params = [{transform_indices = @transform_0, window_bounds = array<i64: 2, 8, 32>}, {pipeline_mode = #tpu.pipeline_mode<synchronous>, transform_indices = @transform_1, window_bounds = array<i64: 32, 64>}, {pipeline_mode = #tpu.pipeline_mode<synchronous>, transform_indices = @transform_2, window_bounds = array<i64: 1, 64>}, {pipeline_mode = #tpu.pipeline_mode<synchronous>, transform_indices = @transform_3, window_bounds = array<i64: 1, 64>}, {transform_indices = @transform_4, window_bounds = array<i64: 2, 32>}, {transform_indices = @transform_5, window_bounds = array<i64: 2, 8>}]} {
    %c0 = arith.constant 0 : index
    %c0_0 = arith.constant 0 : index
    %c0_1 = arith.constant 0 : index
    %0 = vector.load %arg1[%c0, %c0_0, %c0_1] : memref<2x8x32xf32, #tpu.memory_space<vmem>>, vector<2x8x32xf32>
    %1 = vector.shape_cast %0 : vector<2x8x32xf32> to vector<16x32xf32>
    %c0_2 = arith.constant 0 : index
    %c0_3 = arith.constant 0 : index
    %2 = vector.load %arg2[%c0_2, %c0_3] : memref<32x64xf32, #tpu.memory_space<vmem>>, vector<32x64xf32>
    %c0_4 = arith.constant 0 : index
    %c0_5 = arith.constant 0 : index
    %3 = vector.load %arg3[%c0_4, %c0_5] : memref<1x64xf32, #tpu.memory_space<vmem>>, vector<1x64xf32>
    %c0_6 = arith.constant 0 : index
    %c0_7 = arith.constant 0 : index
    %4 = vector.load %arg4[%c0_6, %c0_7] : memref<1x64xf32, #tpu.memory_space<vmem>>, vector<1x64xf32>
    %cst = arith.constant dense<0.000000e+00> : vector<16x64xf32>
    %5 = tpu.matmul %1, %2, %cst {dimension_numbers = #tpu.dot_dimension_numbers<[1], [0], [0], [1], [0, 0, 1, 1], [], []>} : vector<16x32xf32>, vector<32x64xf32>, vector<16x64xf32> -> vector<16x64xf32>
    %6 = vector.broadcast %3 : vector<1x64xf32> to vector<16x64xf32>
    %7 = arith.addf %5, %6 : vector<16x64xf32>
    %8 = math.tanh %7 : vector<16x64xf32>
    %9 = vector.broadcast %4 : vector<1x64xf32> to vector<16x64xf32>
    %10 = arith.mulf %8, %9 : vector<16x64xf32>
    %cst_8 = arith.constant dense<0.000000e+00> : vector<16xf32>
    %11 = vector.multi_reduction <add>, %10, %cst_8 [1] : vector<16x64xf32> to vector<16xf32>
    %12 = vector.shape_cast %11 : vector<16xf32> to vector<16x1xf32>
    %13 = vector.shape_cast %12 : vector<16x1xf32> to vector<2x8x1xf32>
    %cst_9 = arith.constant dense<0xFF800000> : vector<2x1xf32>
    %14 = vector.multi_reduction <maximumf>, %13, %cst_9 [1] : vector<2x8x1xf32> to vector<2x1xf32>
    %15 = vector.shape_cast %14 : vector<2x1xf32> to vector<2x1x1xf32>
    %16 = vector.broadcast %15 : vector<2x1x1xf32> to vector<2x8x1xf32>
    %17 = arith.subf %13, %16 : vector<2x8x1xf32>
    %18 = math.exp %17 : vector<2x8x1xf32>
    %cst_10 = arith.constant dense<0.000000e+00> : vector<2x1xf32>
    %19 = vector.multi_reduction <add>, %18, %cst_10 [1] : vector<2x8x1xf32> to vector<2x1xf32>
    %20 = vector.shape_cast %19 : vector<2x1xf32> to vector<2x1x1xf32>
    %21 = vector.broadcast %20 : vector<2x1x1xf32> to vector<2x8x1xf32>
    %22 = arith.divf %18, %21 : vector<2x8x1xf32>
    %23 = vector.broadcast %22 : vector<2x8x1xf32> to vector<2x8x32xf32>
    %24 = arith.mulf %23, %0 : vector<2x8x32xf32>
    %cst_11 = arith.constant dense<0.000000e+00> : vector<2x32xf32>
    %25 = vector.multi_reduction <add>, %24, %cst_11 [1] : vector<2x8x32xf32> to vector<2x32xf32>
    %c0_12 = arith.constant 0 : index
    %c0_13 = arith.constant 0 : index
    %26 = vector.load %arg5[%c0_12, %c0_13] : memref<2x32xf32, #tpu.memory_space<vmem>>, vector<2x32xf32>
    tpu.vector_store %arg5[%c0_12, %c0_13], %25 {strides = array<i32>} : memref<2x32xf32, #tpu.memory_space<vmem>>, vector<2x32xf32>,
    %27 = tpu.iota {dimensions = array<i32: 1>} : vector<1x8x8xi32>
    %28 = tpu.iota {dimensions = array<i32: 2>} : vector<1x8x8xi32>
    %29 = arith.cmpi eq, %27, %28 : vector<1x8x8xi32>
    %30 = arith.extui %29 : vector<1x8x8xi1> to vector<1x8x8xi32>
    %31 = arith.sitofp %30 : vector<1x8x8xi32> to vector<1x8x8xf32>
    %32 = vector.broadcast %22 : vector<2x8x1xf32> to vector<2x8x8xf32>
    %33 = vector.broadcast %31 : vector<1x8x8xf32> to vector<2x8x8xf32>
    %34 = arith.mulf %32, %33 : vector<2x8x8xf32>
    %cst_14 = arith.constant dense<0.000000e+00> : vector<2x8xf32>
    %35 = vector.multi_reduction <add>, %34, %cst_14 [1] : vector<2x8x8xf32> to vector<2x8xf32>
    %c0_15 = arith.constant 0 : index
    %c0_16 = arith.constant 0 : index
    %36 = vector.load %arg6[%c0_15, %c0_16] : memref<2x8xf32, #tpu.memory_space<vmem>>, vector<2x8xf32>
    tpu.vector_store %arg6[%c0_15, %c0_16], %35 {strides = array<i32>} : memref<2x8xf32, #tpu.memory_space<vmem>>, vector<2x8xf32>,
    return
  }
  func.func @transform_0(%arg0: i32) -> (i32, i32, i32) {
    %c0_i32 = arith.constant 0 : i32
    %c0_i32_0 = arith.constant 0 : i32
    %c0_i32_1 = arith.constant 0 : i32
    return %arg0, %c0_i32, %c0_i32_0 : i32, i32, i32
  }
  func.func @transform_1(%arg0: i32) -> (i32, i32) {
    %c0_i32 = arith.constant 0 : i32
    %c0_i32_0 = arith.constant 0 : i32
    %c0_i32_1 = arith.constant 0 : i32
    return %c0_i32, %c0_i32_0 : i32, i32
  }
  func.func @transform_2(%arg0: i32) -> (i32, i32) {
    %c0_i32 = arith.constant 0 : i32
    %c0_i32_0 = arith.constant 0 : i32
    %c0_i32_1 = arith.constant 0 : i32
    return %c0_i32, %c0_i32_0 : i32, i32
  }
  func.func @transform_3(%arg0: i32) -> (i32, i32) {
    %c0_i32 = arith.constant 0 : i32
    %c0_i32_0 = arith.constant 0 : i32
    %c0_i32_1 = arith.constant 0 : i32
    return %c0_i32, %c0_i32_0 : i32, i32
  }
  func.func @transform_4(%arg0: i32) -> (i32, i32) {
    %c0_i32 = arith.constant 0 : i32
    %c0_i32_0 = arith.constant 0 : i32
    return %arg0, %c0_i32 : i32, i32
  }
  func.func @transform_5(%arg0: i32) -> (i32, i32) {
    %c0_i32 = arith.constant 0 : i32
    %c0_i32_0 = arith.constant 0 : i32
    return %arg0, %c0_i32 : i32, i32
  }
}

</mosaic_0001>

<llo_original>
// kernel: tpu_custom_call.1
$region0: #{tpu_custom_call.1}
  #allocation0 [shape = 'u32[]', space=smem, size = 0x4, offset = 0x4, fixed_abs, tag = 'smem constant byte address 0x4 - core index']
  #allocation1 [shape = 'u32[72,128]{1,0:T(1,128)}', space=vmem, size = 0x9000, scoped, tag = 'internal scratch']
  %s0 = inlined_call_operand.hbm [shape: f32[2,8,32], index: 0, kind: input, shape index: {}]
  %s1 = inlined_call_operand.hbm [shape: f32[32,64], index: 1, kind: input, shape index: {}]
  %s2 = inlined_call_operand.vmem [shape: f32[1,64], index: 2, kind: input, shape index: {}]
  %s3 = inlined_call_operand.vmem [shape: f32[1,64], index: 3, kind: input, shape index: {}]
  %s4 = inlined_call_operand.hbm [shape: f32[2,32], index: 4, kind: output, shape index: {0}]
  %s5 = inlined_call_operand.hbm [shape: f32[2,8], index: 5, kind: output, shape index: {1}]
  %6 = xla_tuple %s4, %s5
  %s7 = sld [smem:[#allocation0]]
  $region42: #{tpu_custom_call.1} parent=0
    _
  %s9 = ssub.s32 1, %s7
  %s10 = scalar_select 0, %s9, %s7
  $region1: #{tpu_custom_call.1} parent=0
    #allocation2 [shape = 'u8[8192]{0}', space=vmem, size = 0x2000, scoped, tag = 'input window, operand 0, single buffered']
    #allocation3 [shape = 's32[1]{0}', space=sflag, size = 0x4, scoped, tag = 'scoped memory for tpu_custom_call.1']
    #allocation4 [shape = 's32[1]{0}', space=sflag, size = 0x4, scoped, tag = 'scoped memory for tpu_custom_call.1']
    #allocation5 [shape = 'u8[16384]{0}', space=vmem, size = 0x4000, scoped, tag = 'input window, operand 1, single buffered']
    #allocation6 [shape = 's32[1]{0}', space=sflag, size = 0x4, scoped, tag = 'scoped memory for tpu_custom_call.1']
    #allocation7 [shape = 'u8[1024]{0}', space=vmem, size = 0x400, scoped, tag = 'output window, operand 0, single buffered']
    #allocation8 [shape = 'u8[1024]{0}', space=vmem, size = 0x400, scoped, tag = 'output window, operand 1, single buffered']
    #allocation9 [shape = 's32[1]{0}', space=sflag, size = 0x4, scoped, tag = 'scoped memory for tpu_custom_call.1']
    %11 = vsyncpa [#allocation3], 0
    %12 = vsyncpa [#allocation6], 0
    %13 = vsyncpa [#allocation4], 0
    %14 = vsyncpa [#allocation9], 0
    // Predicated region
    $region2: #{tpu_custom_call.1} parent=1 // pred_check
      _
    $region3: #{tpu_custom_call.1} parent=1 // pred_check_branch
      %16 = sbr.rel (0) target = $region5
    $region4: #{tpu_custom_call.1} parent=1 // pred_region
      %18 = vsyncadd [#allocation3], 0
      %s19 = sshll.u32 %s0, 4
      %s20 = int_to_ptr.hbm [resolvable:$true] %s19
      %s21 = sshll.u32 [#allocation2], 4
      %s22 = int_to_ptr.vmem [resolvable:$true] %s21
      %27 = dma.hbm_to_vmem [thread:$0]  %s20, 256, %s22, [#allocation3], 128, 128, 8
    $region5: #{tpu_custom_call.1} parent=1 // pred_fallthru
      _
    // Predicated region
    $region6: #{tpu_custom_call.1} parent=1 // pred_check
      _
    $region7: #{tpu_custom_call.1} parent=1 // pred_check_branch
      %29 = sbr.rel (0) target = $region9
    $region8: #{tpu_custom_call.1} parent=1 // pred_region
      %31 = vsyncadd [#allocation6], 0
      %s32 = sshll.u32 %s1, 4
      %s33 = int_to_ptr.hbm [resolvable:$true] %s32
      %s34 = sshll.u32 [#allocation5], 4
      %s35 = int_to_ptr.vmem [resolvable:$true] %s34
      %40 = dma.hbm_to_vmem [thread:$0]  %s33, 512, %s35, [#allocation6], 128, 128, 8
    $region9: #{tpu_custom_call.1} parent=1 // pred_fallthru
      _
    // Predicated region
    $region10: #{tpu_custom_call.1} parent=1 // pred_check
      _
    $region11: #{tpu_custom_call.1} parent=1 // pred_check_branch
      %42 = sbr.rel (0) target = $region13
    $region12: #{tpu_custom_call.1} parent=1 // pred_region
      _
    $region13: #{tpu_custom_call.1} parent=1 // pred_fallthru
      _
    // Predicated region
    $region14: #{tpu_custom_call.1} parent=1 // pred_check
      _
    $region15: #{tpu_custom_call.1} parent=1 // pred_check_branch
      %44 = sbr.rel (0) target = $region17
    $region16: #{tpu_custom_call.1} parent=1 // pred_region
      _
    $region17: #{tpu_custom_call.1} parent=1 // pred_fallthru
      _
    // Predicated region
    $region18: #{tpu_custom_call.1} parent=1 // pred_check
      _
    $region19: #{tpu_custom_call.1} parent=1 // pred_check_branch
      %46 = sbr.rel (0) target = $region21
    $region20: #{tpu_custom_call.1} parent=1 // pred_region
      %48 = dma.done [#allocation3], 256
    $region21: #{tpu_custom_call.1} parent=1 // pred_fallthru
      _
    // Predicated region
    $region22: #{tpu_custom_call.1} parent=1 // pred_check
      _
    $region23: #{tpu_custom_call.1} parent=1 // pred_check_branch
      %50 = sbr.rel (0) target = $region25
    $region24: #{tpu_custom_call.1} parent=1 // pred_region
      %52 = dma.done [#allocation6], 512
    $region25: #{tpu_custom_call.1} parent=1 // pred_fallthru
      _
    %v53 = vld [vmem:[#allocation2] sm:$0xff]
    %v54 = vld [vmem:[#allocation2 + $0x8] sm:$0xff]
    %v55 = vld [vmem:[#allocation5] sm:$0xff]
    %v56 = vld [vmem:[#allocation5 + $0x8] sm:$0xff]
    %v57 = vld [vmem:[#allocation5 + $0x10] sm:$0xff]
    %v58 = vld [vmem:[#allocation5 + $0x18] sm:$0xff]
    %v59 = vld [vmem:[%s2] sm:$0x1]
    %v60 = vld [vmem:[%s3] sm:$0x1]
    %v62 = vperm.slane %v59, 0
    %vm64 = vcmask 261120
    %v66 = vsel %vm64, %v53, 0
    %v69 = vsel %vm64, %v54, 0
    %71 = vmatpush.msra.mxu0 0.0
    %72 = vmatpush.msra.mxu0 0.0
    %73 = vmatpush.msra.mxu0 0.0
    %74 = vmatpush.msra.mxu0 0.0
    %75 = vmatpush.msra.mxu0 0.0
    %76 = vmatpush.msra.mxu0 0.0
    %77 = vmatpush.msra.mxu0 0.0
    %78 = vmatpush.msra.mxu0 0.0
    %79 = vmatpush.msra.mxu0 0.0
    %80 = vmatpush.msra.mxu0 0.0
    %81 = vmatpush.msra.mxu0 0.0
    %82 = vmatpush.msra.mxu0 0.0
    %83 = vmatpush.msra.mxu0 %v58
    %84 = vmatpush.msra.mxu0 %v57
    %85 = vmatpush.msra.mxu0 %v56
    %86 = vmatpush.msra.mxu0 %v55
    %87 = vmatmul.f32.gmra.mxu0 %v66
    %v88 = vpop.f32.mrf.mxu0
    %v89 = vadd.f32 %v62, %v88
    %90 = vmatmul.f32.gmra.mxu0 %v69
    %v91 = vpop.f32.mrf.mxu0
    %v92 = vadd.f32 %v62, %v91
    %93 = vdwg.mxu0
    %v94 = vtanh.pop %v89
    %v95 = vtanh.pop %v92
    %v97 = vperm.slane %v60, 0
    %v99 = vmul.f32 %v94, %v97
    %v100 = vmul.f32 %v95, %v97
    %vm101 = vcmask 523264
    %v102 = vsel %vm101, %v99, 0.0
    %103 = vadd.xlane.f32.xlu0 %v102
    %v104 = vpop.xlane.xlu0 %103
    %v105 = vsel %vm101, %v100, 0.0
    %106 = vadd.xlane.f32.xlu0 %v105
    %v107 = vpop.xlane.xlu0 %106
    %v108 = vrot.slane %v104, 4
    %v109 = vmax.f32 %v104, %v108
    %v110 = vrot.slane %v109, 2
    %v111 = vmax.f32 %v109, %v110
    %v112 = vrot.slane %v111, 1
    %v113 = vmax.f32 %v111, %v112
    %v114 = vrot.slane %v107, 4
    %v115 = vmax.f32 %v107, %v114
    %v116 = vrot.slane %v115, 2
    %v117 = vmax.f32 %v115, %v116
    %v118 = vrot.slane %v117, 1
    %v119 = vmax.f32 %v117, %v118
    %v120 = vsub.f32 %v104, %v113
    %v121 = vsub.f32 %v107, %v119
    %v122 = vmul.f32 %v120, 1.442695
    %v123 = vpow.pop %v122
    %v124 = vmul.f32 %v121, 1.442695
    %v125 = vpow.pop %v124
    %v126 = vrot.slane %v123, 4
    %v127 = vadd.f32 %v123, %v126
    %v128 = vrot.slane %v127, 2
    %v129 = vadd.f32 %v127, %v128
    %v130 = vrot.slane %v129, 1
    %v131 = vadd.f32 %v129, %v130
    %v132 = vrot.slane %v125, 4
    %v133 = vadd.f32 %v125, %v132
    %v134 = vrot.slane %v133, 2
    %v135 = vadd.f32 %v133, %v134
    %v136 = vrot.slane %v135, 1
    %v137 = vadd.f32 %v135, %v136
    %v138 = vrcp.pop %v131
    %v139 = vmul.f32 %v131, %v138
    %v140 = vsub.f32 1.0, %v139
    %v141 = vmul.f32 %v138, %v140
    %v142 = vadd.f32 %v138, %v141
    %vm143 = vweird.f32 %v131
    %vm144 = vweird.f32 %v138
    %vm145 = vmor %vm143, %vm144
    %v146 = vsel %vm145, %v138, %v142
    %v147 = vand.u32 2147483647, %v131
    %vm148 = vcmp.eq.f32.partialorder %v147, 8.507059e+37
    %v149 = vand.u32 %v131, 2147483648
    %v150 = vor.u32 1.1754944e-38, %v149
    %v151 = vsel %vm148, %v150, %v146
    %v152 = vmul.f32 %v123, %v151
    %v153 = vrcp.pop %v137
    %v154 = vmul.f32 %v137, %v153
    %v155 = vsub.f32 1.0, %v154
    %v156 = vmul.f32 %v153, %v155
    %v157 = vadd.f32 %v153, %v156
    %vm158 = vweird.f32 %v137
    %vm159 = vweird.f32 %v153
    %vm160 = vmor %vm158, %vm159
    %v161 = vsel %vm160, %v153, %v157
    %v162 = vand.u32 2147483647, %v137
    %vm163 = vcmp.eq.f32.partialorder %v162, 8.507059e+37
    %v164 = vand.u32 %v137, 2147483648
    %v165 = vor.u32 1.1754944e-38, %v164
    %v166 = vsel %vm163, %v165, %v161
    %v167 = vmul.f32 %v125, %v166
    %v168 = vmul.f32 %v152, %v53
    %v169 = vmul.f32 %v167, %v54
    %v170 = vsel %vm64, %v168, 0.0
    %v171 = vrot.slane %v170, 4
    %v172 = vadd.f32 %v170, %v171
    %v173 = vrot.slane %v172, 2
    %v174 = vadd.f32 %v172, %v173
    %v175 = vrot.slane %v174, 1
    %v176 = vadd.f32 %v174, %v175
    %v177 = vsel %vm64, %v169, 0.0
    %v178 = vrot.slane %v177, 4
    %v179 = vadd.f32 %v177, %v178
    %v180 = vrot.slane %v179, 2
    %v181 = vadd.f32 %v179, %v180
    %v182 = vrot.slane %v181, 1
    %v183 = vadd.f32 %v181, %v182
    %vm186 = vcmask 1041409
    %v187 = vsel %vm186, %v183, %v176
    %vm189 = vcmask 254976
    %190 = vst.msk [vmem:[#allocation7] sm:$0x3] %vm189, %v187
    %v191 = vlaneseq
    %v192 = vshrl.u32 %v191, 7
    %v193 = vlaneseq
    %v194 = vand.u32 %v193, 127
    %vm195 = vcmp.eq.s32.totalorder %v192, %v194
    %v196 = vsel %vm195, 1, 0
    %v197 = vcvt.s32.f32 %v196
    %v198 = vmul.f32 %v152, %v197
    %v199 = vmul.f32 %v167, %v197
    %vm200 = vcmask 64512
    %v201 = vsel %vm200, %v198, 0.0
    %v202 = vrot.slane %v201, 4
    %v203 = vadd.f32 %v201, %v202
    %v204 = vrot.slane %v203, 2
    %v205 = vadd.f32 %v203, %v204
    %v206 = vrot.slane %v205, 1
    %v207 = vadd.f32 %v205, %v206
    %v208 = vsel %vm200, %v199, 0.0
    %v209 = vrot.slane %v208, 4
    %v210 = vadd.f32 %v208, %v209
    %v211 = vrot.slane %v210, 2
    %v212 = vadd.f32 %v210, %v211
    %v213 = vrot.slane %v212, 1
    %v214 = vadd.f32 %v212, %v213
    %v217 = vsel %vm186, %v214, %v207
    %vm219 = vcmask 58368
    %220 = vst.msk [vmem:[#allocation8] sm:$0x3] %vm219, %v217
    // Predicated region
    $region26: #{tpu_custom_call.1} parent=1 // pred_check
      _
    $region27: #{tpu_custom_call.1} parent=1 // pred_check_branch
      %222 = sbr.rel (0) target = $region29
    $region28: #{tpu_custom_call.1} parent=1 // pred_region
      %224 = vsyncadd [#allocation4], 0
      %s226 = sshll.u32 [#allocation7], 4
      %s227 = int_to_ptr.vmem [resolvable:$true] %s226
      %s228 = sshll.u32 %s4, 4
      %s229 = int_to_ptr.hbm [resolvable:$true] %s228
      %231 = dma.vmem_to_hbm [thread:$0]  %s227, 32, %s229, [#allocation4]
    $region29: #{tpu_custom_call.1} parent=1 // pred_fallthru
      _
    // Predicated region
    $region30: #{tpu_custom_call.1} parent=1 // pred_check
      _
    $region31: #{tpu_custom_call.1} parent=1 // pred_check_branch
      %233 = sbr.rel (0) target = $region33
    $region32: #{tpu_custom_call.1} parent=1 // pred_region
      %235 = vsyncadd [#allocation9], 0
      %s237 = sshll.u32 [#allocation8], 4
      %s238 = int_to_ptr.vmem [resolvable:$true] %s237
      %s239 = sshll.u32 %s5, 4
      %s240 = int_to_ptr.hbm [resolvable:$true] %s239
      %242 = dma.vmem_to_hbm [thread:$0]  %s238, 32, %s240, [#allocation9]
    $region33: #{tpu_custom_call.1} parent=1 // pred_fallthru
      _
    // Predicated region
    $region34: #{tpu_custom_call.1} parent=1 // pred_check
      _
    $region35: #{tpu_custom_call.1} parent=1 // pred_check_branch
      %244 = sbr.rel (0) target = $region37
    $region36: #{tpu_custom_call.1} parent=1 // pred_region
      %246 = dma.done [#allocation4], 32
    $region37: #{tpu_custom_call.1} parent=1 // pred_fallthru
      _
    // Predicated region
    $region38: #{tpu_custom_call.1} parent=1 // pred_check
      _
    $region39: #{tpu_custom_call.1} parent=1 // pred_check_branch
      %248 = sbr.rel (0) target = $region41
    $region40: #{tpu_custom_call.1} parent=1 // pred_region
      %250 = dma.done [#allocation9], 32
    $region41: #{tpu_custom_call.1} parent=1 // pred_fallthru
      _
    %251 = vsyncpa [#allocation3], 1
    %252 = vsyncpa [#allocation6], 1
    %253 = vsyncpa [#allocation4], 1
    %254 = vsyncpa [#allocation9], 1

</llo_original>
